<compile_context>
chip_gen: v5e
topology: v5e:2x2
jax: 0.10.0
libtpu: 0.0.40
codegen_flags: <defaults>
</compile_context>

<pallas_src>
import numpy as np
import jax
import jax.numpy as jnp
from jax.experimental import pallas as pl
from jax.experimental.pallas import tpu as pltpu

EDGE_TILE = 512  # edges per grid step == lane width of the score output slab


def _round_up(v, m):
    return (v + m - 1) // m * m


# ---------------------------------------------------------------------------
# Fused encode + decode kernel.
#
# Grid: (num_edge_tiles,).  Step 0 computes z^T into VMEM scratch (pl.when);
# every step decodes one tile of EDGE_TILE edges against that scratch.
# ---------------------------------------------------------------------------
def nvgf_kernel(src_ref, dst_ref,                    # [1, TE] int32 edge endpoints
                xt_ref, adjt_ref, w1t_ref, w23t_ref, # transposed encode inputs
                noiset_ref,                          # [d2, n_pad]
                wct_ref, wcb_ref, w3b_ref,           # folded decode weights [d2, 1]
                out_ref,                             # [1, TE] scores
                zt_ref):                             # scratch: z^T  [d2, n_pad]
    f32 = jnp.float32
    d2, n_pad = zt_ref.shape
    te = out_ref.shape[1]

    # ---- encode (once; z^T stays resident in VMEM scratch) ---------------
    @pl.when(pl.program_id(0) == 0)
    def _encode():
        # All math in the transposed domain: (A @ B)^T = B^T @ A^T.
        xw1_t = jnp.dot(w1t_ref[...], xt_ref[...],
                        preferred_element_type=f32)              # [d1, n_pad]
        h_t = jnp.maximum(
            jnp.dot(xw1_t, adjt_ref[...], preferred_element_type=f32), 0.0)
        ml_t = jnp.dot(jnp.dot(w23t_ref[...], h_t, preferred_element_type=f32),
                       adjt_ref[...], preferred_element_type=f32)  # [2*d2, n_pad]
        mean_t = ml_t[:d2, :]
        logstd_t = ml_t[d2:, :]
        zt_ref[...] = (noiset_ref[...] * jnp.exp(logstd_t)
                       + mean_t).astype(zt_ref.dtype)

    # ---- decode: one-hot MXU gather + folded-weight score ----------------
    iota_nodes = jax.lax.broadcasted_iota(jnp.int32, (n_pad, te), 0)
    oh_i = (iota_nodes == src_ref[...]).astype(f32)               # [n_pad, TE]
    oh_j = (iota_nodes == dst_ref[...]).astype(f32)

    zt = zt_ref[...]                                              # [d2, n_pad]
    zi_t = jnp.dot(zt, oh_i, preferred_element_type=f32)          # [d2, TE]
    zj_t = jnp.dot(zt, oh_j, preferred_element_type=f32)          # [d2, TE]

    # score = relu(zi) @ (W_two_top @ W3_top) + relu(zj) @ (W_two_bot @ W3_top)
    #         + (zi * zj) @ W3_bot
    # computed as VPU multiplies + one sublane reduce (lane-dense result).
    contrib = (wct_ref[...] * jnp.maximum(zi_t, 0.0)
               + wcb_ref[...] * jnp.maximum(zj_t, 0.0)
               + w3b_ref[...] * (zi_t * zj_t))                    # [d2, TE]
    score = jnp.sum(contrib, axis=0, keepdims=True)               # [1, TE]
    out_ref[...] = jax.nn.sigmoid(score).astype(out_ref.dtype)


# ---------------------------------------------------------------------------
# Full forward (NVGF.forward)
# ---------------------------------------------------------------------------
def nvgf_forward(x, adj, w1, w2, w3, w_two, w_three, noise,
                 train_edges, train_false_edges):
    n, d_in = x.shape
    d1 = w1.shape[1]
    d2 = w2.shape[1]

    # Pad node dim to a sublane multiple (zero rows/cols; padded nodes give
    # z == 0 and are never referenced by any edge index).
    n_pad = _round_up(n, 8)
    if n_pad != n:
        p = n_pad - n
        x = jnp.pad(x, ((0, p), (0, 0)))
        adj = jnp.pad(adj, ((0, p), (0, p)))
        noise = jnp.pad(noise, ((0, p), (0, 0)))

    # Transposed encode inputs (node axis on lanes inside the kernel).
    xt = x.T                                        # [d_in, n_pad]
    adjt = adj.T                                    # [n_pad, n_pad]
    w1t = w1.T                                      # [d1, d_in]
    w23t = jnp.concatenate([w2, w3], axis=1).T      # [2*d2, d1]  ([w2|w3])^T
    noiset = noise.T                                # [d2, n_pad]

    # Fold W_two into W_three (no nonlinearity between them):
    #   cat(relu(zi),relu(zj)) @ W_two @ W_three[:d2] + (zi*zj) @ W_three[d2:]
    w_comb = w_two @ w_three[:d2, :]                # [2*d2, 1]
    wc_top = w_comb[:d2, :]                         # [d2, 1]
    wc_bot = w_comb[d2:, :]                         # [d2, 1]
    w3_bot = w_three[d2:, :]                        # [d2, 1]

    # True edges then false edges (matches torch.cat order), padded with dummy
    # (0, 0) edges to a whole number of EDGE_TILE-wide tiles; padding sliced off.
    all_edges = jnp.concatenate([train_edges, train_false_edges],
                                axis=0).astype(jnp.int32)
    e_total = int(all_edges.shape[0])
    e_pad = _round_up(max(e_total, 1), EDGE_TILE)
    src_idx = jnp.zeros((1, e_pad), jnp.int32).at[0, :e_total].set(all_edges[:, 0])
    dst_idx = jnp.zeros((1, e_pad), jnp.int32).at[0, :e_total].set(all_edges[:, 1])
    num_tiles = e_pad // EDGE_TILE

    const = lambda t: (0, 0)
    tile = lambda t: (0, t)

    grid_spec = pltpu.PrefetchScalarGridSpec(
        num_scalar_prefetch=0,
        grid=(num_tiles,),
        in_specs=[
            pl.BlockSpec((1, EDGE_TILE), tile),        # src indices (per tile)
            pl.BlockSpec((1, EDGE_TILE), tile),        # dst indices (per tile)
            pl.BlockSpec((d_in, n_pad), const),        # x^T        (resident)
            pl.BlockSpec((n_pad, n_pad), const),       # adj^T      (resident)
            pl.BlockSpec((d1, d_in), const),           # W1^T
            pl.BlockSpec((2 * d2, d1), const),         # [W2|W3]^T
            pl.BlockSpec((d2, n_pad), const),          # noise^T
            pl.BlockSpec((d2, 1), const),              # Wc_top
            pl.BlockSpec((d2, 1), const),              # Wc_bot
            pl.BlockSpec((d2, 1), const),              # W_three bottom half
        ],
        out_specs=pl.BlockSpec((1, EDGE_TILE), tile),
        scratch_shapes=[pltpu.VMEM((d2, n_pad), jnp.float32)],   # z^T
    )

    flops = (2 * d1 * d_in * n_pad + 2 * d1 * n_pad * n_pad
             + 2 * (2 * d2) * d1 * n_pad + 2 * (2 * d2) * n_pad * n_pad
             + 4 * d2 * n_pad
             + num_tiles * (2 * 2 * d2 * n_pad * EDGE_TILE
                            + 8 * d2 * EDGE_TILE + 2 * EDGE_TILE))
    cost = pl.CostEstimate(
        flops=int(flops),
        transcendentals=int(d2 * n_pad + e_pad),
        bytes_accessed=int(4 * (x.size + adj.size + w1.size + 2 * d1 * d2
                                + noise.size + 3 * d2 + 3 * e_pad)),
    )

    scores = pl.pallas_call(
        nvgf_kernel,
        out_shape=jax.ShapeDtypeStruct((1, e_pad), jnp.float32),
        grid_spec=grid_spec,
        # "arbitrary": grid step 0 fills the z scratch consumed by later steps,
        # so the edge axis must run sequentially on one core.
        compiler_params=pltpu.CompilerParams(
            dimension_semantics=("arbitrary",)),
        cost_estimate=cost,
    )(src_idx, dst_idx, xt, adjt, w1t, w23t, noiset, wc_top, wc_bot, w3_bot)

    # Restore the torch [E, 1] output contract.
    return scores[0, :e_total].reshape(e_total, 1)


# ---------------------------------------------------------------------------
# Helpers / reference
# ---------------------------------------------------------------------------
def glorot_init(key, input_dim, output_dim):
    r = np.sqrt(6.0 / (input_dim + output_dim))
    return jax.random.uniform(key, (input_dim, output_dim), jnp.float32, -r, r)


def reference_forward(x, adj, w1, w2, w3, w_two, w_three, noise,
                      train_edges, train_false_edges):
    # Pure-JAX re-statement of the exact PyTorch forward.
    h = jnp.maximum(adj @ (x @ w1), 0.0)
    mean = adj @ (h @ w2)
    logstd = adj @ (h @ w3)
    z = noise * jnp.exp(logstd) + mean
    edges = jnp.concatenate([train_edges, train_false_edges], axis=0)
    zi = z[edges[:, 0]]
    zj = z[edges[:, 1]]
    pair = jnp.maximum(jnp.concatenate([zi, zj], axis=1), 0.0) @ w_two
    feat = jnp.concatenate([pair, zi * zj], axis=1)
    return jax.nn.sigmoid(feat @ w_three)


if __name__ == "__main__":
    key = jax.random.PRNGKey(0)
    ks = jax.random.split(key, 10)

    N = 16            # nodes
    INPUT_DIM = 8     # args.input_dim
    HIDDEN1 = 32      # args.hidden1_dim
    HIDDEN2 = 16      # args.hidden2_dim
    E_TRUE, E_FALSE = 8, 8

    x = jax.random.normal(ks[0], (N, INPUT_DIM), jnp.float32)

    # Symmetric, self-looped, degree-normalized adjacency.
    a = (jax.random.uniform(ks[1], (N, N)) < 0.3).astype(jnp.float32)
    a = jnp.minimum(jnp.maximum(a, a.T) + jnp.eye(N, dtype=jnp.float32), 1.0)
    deg = jnp.sum(a, axis=1, keepdims=True)
    adj = a / jnp.sqrt(deg) / jnp.sqrt(deg.T)

    w1 = glorot_init(ks[2], INPUT_DIM, HIDDEN1)        # enc_weight_1
    w2 = glorot_init(ks[3], HIDDEN1, HIDDEN2)          # enc_weight_2
    w3 = glorot_init(ks[4], HIDDEN1, HIDDEN2)          # enc_weight_3
    w_two = glorot_init(ks[5], HIDDEN2 * 2, HIDDEN2)   # weight_two
    w_three = glorot_init(ks[6], HIDDEN2 * 2, 1)       # weight_three

    # torch.randn equivalent, generated host-side so the run is deterministic.
    noise = jax.random.normal(ks[7], (N, HIDDEN2), jnp.float32)

    train_edges = jax.random.randint(ks[8], (E_TRUE, 2), 0, N, jnp.int32)
    train_false_edges = jax.random.randint(ks[9], (E_FALSE, 2), 0, N, jnp.int32)

    out = nvgf_forward(x, adj, w1, w2, w3, w_two, w_three, noise,
                       train_edges, train_false_edges)
    out = jax.block_until_ready(out)

    ref = reference_forward(x, adj, w1, w2, w3, w_two, w_three, noise,
                            train_edges, train_false_edges)
    assert out.shape == (E_TRUE + E_FALSE, 1)
    np.testing.assert_allclose(np.asarray(out), np.asarray(ref),
                               rtol=1e-2, atol=2e-3)

    print("KERNEL_OK")
</pallas_src>

<mosaic_0001>
module attributes {stable_mosaic.version = 11 : i64} {
  func.func @nvgf_kernel(%arg0: i32, %arg1: memref<1x512xi32, #tpu.memory_space<vmem>>, %arg2: memref<1x512xi32, #tpu.memory_space<vmem>>, %arg3: memref<8x16xf32, #tpu.memory_space<vmem>>, %arg4: memref<16x16xf32, #tpu.memory_space<vmem>>, %arg5: memref<32x8xf32, #tpu.memory_space<vmem>>, %arg6: memref<32x32xf32, #tpu.memory_space<vmem>>, %arg7: memref<16x16xf32, #tpu.memory_space<vmem>>, %arg8: memref<16x1xf32, #tpu.memory_space<vmem>>, %arg9: memref<16x1xf32, #tpu.memory_space<vmem>>, %arg10: memref<16x1xf32, #tpu.memory_space<vmem>>, %arg11: memref<1x512xf32, #tpu.memory_space<vmem>>, %arg12: memref<16x16xf32, #tpu.memory_space<vmem>>) attributes {dimension_semantics = [#tpu.dimension_semantics<arbitrary>], iteration_bounds = array<i64: 1>, scalar_prefetch = 0 : i64, scratch_operands = 1 : i64, tpu.core_type = #tpu.core_type<tc>, window_params = [{transform_indices = @transform_0, window_bounds = array<i64: 1, 512>}, {transform_indices = @transform_1, window_bounds = array<i64: 1, 512>}, {pipeline_mode = #tpu.pipeline_mode<synchronous>, transform_indices = @transform_2, window_bounds = array<i64: 8, 16>}, {pipeline_mode = #tpu.pipeline_mode<synchronous>, transform_indices = @transform_3, window_bounds = array<i64: 16, 16>}, {pipeline_mode = #tpu.pipeline_mode<synchronous>, transform_indices = @transform_4, window_bounds = array<i64: 32, 8>}, {pipeline_mode = #tpu.pipeline_mode<synchronous>, transform_indices = @transform_5, window_bounds = array<i64: 32, 32>}, {pipeline_mode = #tpu.pipeline_mode<synchronous>, transform_indices = @transform_6, window_bounds = array<i64: 16, 16>}, {pipeline_mode = #tpu.pipeline_mode<synchronous>, transform_indices = @transform_7, window_bounds = array<i64: 16, 1>}, {pipeline_mode = #tpu.pipeline_mode<synchronous>, transform_indices = @transform_8, window_bounds = array<i64: 16, 1>}, {pipeline_mode = #tpu.pipeline_mode<synchronous>, transform_indices = @transform_9, window_bounds = array<i64: 16, 1>}, {transform_indices = @transform_10, window_bounds = array<i64: 1, 512>}]} {
    %c0_i32 = arith.constant 0 : i32
    %0 = arith.cmpi eq, %arg0, %c0_i32 : i32
    %1 = arith.extui %0 : i1 to i32
    %c0_i32_0 = arith.constant 0 : i32
    %2 = arith.cmpi ne, %1, %c0_i32_0 : i32
    scf.if %2 {
      %c0_19 = arith.constant 0 : index
      %c0_20 = arith.constant 0 : index
      %41 = vector.load %arg5[%c0_19, %c0_20] : memref<32x8xf32, #tpu.memory_space<vmem>>, vector<32x8xf32>
      %c0_21 = arith.constant 0 : index
      %c0_22 = arith.constant 0 : index
      %42 = vector.load %arg3[%c0_21, %c0_22] : memref<8x16xf32, #tpu.memory_space<vmem>>, vector<8x16xf32>
      %cst_23 = arith.constant dense<0.000000e+00> : vector<32x16xf32>
      %43 = tpu.matmul %41, %42, %cst_23 {dimension_numbers = #tpu.dot_dimension_numbers<[1], [0], [0], [1], [0, 0, 1, 1], [], []>} : vector<32x8xf32>, vector<8x16xf32>, vector<32x16xf32> -> vector<32x16xf32>
      %c0_24 = arith.constant 0 : index
      %c0_25 = arith.constant 0 : index
      %44 = vector.load %arg4[%c0_24, %c0_25] : memref<16x16xf32, #tpu.memory_space<vmem>>, vector<16x16xf32>
      %cst_26 = arith.constant dense<0.000000e+00> : vector<32x16xf32>
      %45 = tpu.matmul %43, %44, %cst_26 {dimension_numbers = #tpu.dot_dimension_numbers<[1], [0], [0], [1], [0, 0, 1, 1], [], []>} : vector<32x16xf32>, vector<16x16xf32>, vector<32x16xf32> -> vector<32x16xf32>
      %cst_27 = arith.constant 0.000000e+00 : f32
      %46 = vector.broadcast %cst_27 : f32 to vector<32x16xf32>
      %47 = arith.maximumf %45, %46 : vector<32x16xf32>
      %c0_28 = arith.constant 0 : index
      %c0_29 = arith.constant 0 : index
      %48 = vector.load %arg6[%c0_28, %c0_29] : memref<32x32xf32, #tpu.memory_space<vmem>>, vector<32x32xf32>
      %cst_30 = arith.constant dense<0.000000e+00> : vector<32x16xf32>
      %49 = tpu.matmul %48, %47, %cst_30 {dimension_numbers = #tpu.dot_dimension_numbers<[1], [0], [0], [1], [0, 0, 1, 1], [], []>} : vector<32x32xf32>, vector<32x16xf32>, vector<32x16xf32> -> vector<32x16xf32>
      %c0_31 = arith.constant 0 : index
      %c0_32 = arith.constant 0 : index
      %50 = vector.load %arg4[%c0_31, %c0_32] : memref<16x16xf32, #tpu.memory_space<vmem>>, vector<16x16xf32>
      %cst_33 = arith.constant dense<0.000000e+00> : vector<32x16xf32>
      %51 = tpu.matmul %49, %50, %cst_33 {dimension_numbers = #tpu.dot_dimension_numbers<[1], [0], [0], [1], [0, 0, 1, 1], [], []>} : vector<32x16xf32>, vector<16x16xf32>, vector<32x16xf32> -> vector<32x16xf32>
      %52 = vector.extract_strided_slice %51 {offsets = [0, 0], sizes = [16, 16], strides = [1, 1]} : vector<32x16xf32> to vector<16x16xf32>
      %53 = vector.extract_strided_slice %51 {offsets = [16, 0], sizes = [16, 16], strides = [1, 1]} : vector<32x16xf32> to vector<16x16xf32>
      %c0_34 = arith.constant 0 : index
      %c0_35 = arith.constant 0 : index
      %54 = vector.load %arg7[%c0_34, %c0_35] : memref<16x16xf32, #tpu.memory_space<vmem>>, vector<16x16xf32>
      %55 = math.exp %53 : vector<16x16xf32>
      %56 = arith.mulf %54, %55 : vector<16x16xf32>
      %57 = arith.addf %56, %52 : vector<16x16xf32>
      %c0_36 = arith.constant 0 : index
      %c0_37 = arith.constant 0 : index
      %58 = vector.load %arg12[%c0_36, %c0_37] : memref<16x16xf32, #tpu.memory_space<vmem>>, vector<16x16xf32>
      tpu.vector_store %arg12[%c0_36, %c0_37], %57 {strides = array<i32>} : memref<16x16xf32, #tpu.memory_space<vmem>>, vector<16x16xf32>,
    } else {
    }
    %3 = tpu.iota {dimensions = array<i32: 0>} : vector<16x512xi32>
    %c0 = arith.constant 0 : index
    %c0_1 = arith.constant 0 : index
    %4 = vector.load %arg1[%c0, %c0_1] : memref<1x512xi32, #tpu.memory_space<vmem>>, vector<1x512xi32>
    %5 = vector.broadcast %4 : vector<1x512xi32> to vector<16x512xi32>
    %6 = arith.cmpi eq, %3, %5 : vector<16x512xi32>
    %7 = arith.extui %6 : vector<16x512xi1> to vector<16x512xi32>
    %8 = arith.sitofp %7 : vector<16x512xi32> to vector<16x512xf32>
    %c0_2 = arith.constant 0 : index
    %c0_3 = arith.constant 0 : index
    %9 = vector.load %arg2[%c0_2, %c0_3] : memref<1x512xi32, #tpu.memory_space<vmem>>, vector<1x512xi32>
    %10 = vector.broadcast %9 : vector<1x512xi32> to vector<16x512xi32>
    %11 = arith.cmpi eq, %3, %10 : vector<16x512xi32>
    %12 = arith.extui %11 : vector<16x512xi1> to vector<16x512xi32>
    %13 = arith.sitofp %12 : vector<16x512xi32> to vector<16x512xf32>
    %c0_4 = arith.constant 0 : index
    %c0_5 = arith.constant 0 : index
    %14 = vector.load %arg12[%c0_4, %c0_5] : memref<16x16xf32, #tpu.memory_space<vmem>>, vector<16x16xf32>
    %cst = arith.constant dense<0.000000e+00> : vector<16x512xf32>
    %15 = tpu.matmul %14, %8, %cst {dimension_numbers = #tpu.dot_dimension_numbers<[1], [0], [0], [1], [0, 0, 1, 1], [], []>} : vector<16x16xf32>, vector<16x512xf32>, vector<16x512xf32> -> vector<16x512xf32>
    %cst_6 = arith.constant dense<0.000000e+00> : vector<16x512xf32>
    %16 = tpu.matmul %14, %13, %cst_6 {dimension_numbers = #tpu.dot_dimension_numbers<[1], [0], [0], [1], [0, 0, 1, 1], [], []>} : vector<16x16xf32>, vector<16x512xf32>, vector<16x512xf32> -> vector<16x512xf32>
    %c0_7 = arith.constant 0 : index
    %c0_8 = arith.constant 0 : index
    %17 = vector.load %arg8[%c0_7, %c0_8] : memref<16x1xf32, #tpu.memory_space<vmem>>, vector<16x1xf32>
    %cst_9 = arith.constant 0.000000e+00 : f32
    %18 = vector.broadcast %cst_9 : f32 to vector<16x512xf32>
    %19 = arith.maximumf %15, %18 : vector<16x512xf32>
    %20 = vector.broadcast %17 : vector<16x1xf32> to vector<16x512xf32>
    %21 = arith.mulf %20, %19 : vector<16x512xf32>
    %c0_10 = arith.constant 0 : index
    %c0_11 = arith.constant 0 : index
    %22 = vector.load %arg9[%c0_10, %c0_11] : memref<16x1xf32, #tpu.memory_space<vmem>>, vector<16x1xf32>
    %cst_12 = arith.constant 0.000000e+00 : f32
    %23 = vector.broadcast %cst_12 : f32 to vector<16x512xf32>
    %24 = arith.maximumf %16, %23 : vector<16x512xf32>
    %25 = vector.broadcast %22 : vector<16x1xf32> to vector<16x512xf32>
    %26 = arith.mulf %25, %24 : vector<16x512xf32>
    %27 = arith.addf %21, %26 : vector<16x512xf32>
    %c0_13 = arith.constant 0 : index
    %c0_14 = arith.constant 0 : index
    %28 = vector.load %arg10[%c0_13, %c0_14] : memref<16x1xf32, #tpu.memory_space<vmem>>, vector<16x1xf32>
    %29 = arith.mulf %15, %16 : vector<16x512xf32>
    %30 = vector.broadcast %28 : vector<16x1xf32> to vector<16x512xf32>
    %31 = arith.mulf %30, %29 : vector<16x512xf32>
    %32 = arith.addf %27, %31 : vector<16x512xf32>
    %cst_15 = arith.constant dense<0.000000e+00> : vector<512xf32>
    %33 = vector.multi_reduction <add>, %32, %cst_15 [0] : vector<16x512xf32> to vector<512xf32>
    %34 = vector.shape_cast %33 : vector<512xf32> to vector<1x512xf32>
    %35 = arith.negf %34 : vector<1x512xf32>
    %36 = math.exp %35 : vector<1x512xf32>
    %cst_16 = arith.constant 1.000000e+00 : f32
    %37 = vector.broadcast %cst_16 : f32 to vector<1x512xf32>
    %38 = arith.addf %37, %36 : vector<1x512xf32>
    %39 = arith.divf %37, %38 : vector<1x512xf32>
    %c0_17 = arith.constant 0 : index
    %c0_18 = arith.constant 0 : index
    %40 = vector.load %arg11[%c0_17, %c0_18] : memref<1x512xf32, #tpu.memory_space<vmem>>, vector<1x512xf32>
    tpu.vector_store %arg11[%c0_17, %c0_18], %39 {strides = array<i32>} : memref<1x512xf32, #tpu.memory_space<vmem>>, vector<1x512xf32>,
    return
  }
  func.func @transform_0(%arg0: i32) -> (i32, i32) {
    %c0_i32 = arith.constant 0 : i32
    %c0_i32_0 = arith.constant 0 : i32
    return %c0_i32, %arg0 : i32, i32
  }
  func.func @transform_1(%arg0: i32) -> (i32, i32) {
    %c0_i32 = arith.constant 0 : i32
    %c0_i32_0 = arith.constant 0 : i32
    return %c0_i32, %arg0 : i32, i32
  }
  func.func @transform_2(%arg0: i32) -> (i32, i32) {
    %c0_i32 = arith.constant 0 : i32
    %c0_i32_0 = arith.constant 0 : i32
    %c0_i32_1 = arith.constant 0 : i32
    return %c0_i32, %c0_i32_0 : i32, i32
  }
  func.func @transform_3(%arg0: i32) -> (i32, i32) {
    %c0_i32 = arith.constant 0 : i32
    %c0_i32_0 = arith.constant 0 : i32
    %c0_i32_1 = arith.constant 0 : i32
    return %c0_i32, %c0_i32_0 : i32, i32
  }
  func.func @transform_4(%arg0: i32) -> (i32, i32) {
    %c0_i32 = arith.constant 0 : i32
    %c0_i32_0 = arith.constant 0 : i32
    %c0_i32_1 = arith.constant 0 : i32
    return %c0_i32, %c0_i32_0 : i32, i32
  }
  func.func @transform_5(%arg0: i32) -> (i32, i32) {
    %c0_i32 = arith.constant 0 : i32
    %c0_i32_0 = arith.constant 0 : i32
    %c0_i32_1 = arith.constant 0 : i32
    return %c0_i32, %c0_i32_0 : i32, i32
  }
  func.func @transform_6(%arg0: i32) -> (i32, i32) {
    %c0_i32 = arith.constant 0 : i32
    %c0_i32_0 = arith.constant 0 : i32
    %c0_i32_1 = arith.constant 0 : i32
    return %c0_i32, %c0_i32_0 : i32, i32
  }
  func.func @transform_7(%arg0: i32) -> (i32, i32) {
    %c0_i32 = arith.constant 0 : i32
    %c0_i32_0 = arith.constant 0 : i32
    %c0_i32_1 = arith.constant 0 : i32
    return %c0_i32, %c0_i32_0 : i32, i32
  }
  func.func @transform_8(%arg0: i32) -> (i32, i32) {
    %c0_i32 = arith.constant 0 : i32
    %c0_i32_0 = arith.constant 0 : i32
    %c0_i32_1 = arith.constant 0 : i32
    return %c0_i32, %c0_i32_0 : i32, i32
  }
  func.func @transform_9(%arg0: i32) -> (i32, i32) {
    %c0_i32 = arith.constant 0 : i32
    %c0_i32_0 = arith.constant 0 : i32
    %c0_i32_1 = arith.constant 0 : i32
    return %c0_i32, %c0_i32_0 : i32, i32
  }
  func.func @transform_10(%arg0: i32) -> (i32, i32) {
    %c0_i32 = arith.constant 0 : i32
    %c0_i32_0 = arith.constant 0 : i32
    return %c0_i32, %arg0 : i32, i32
  }
}

</mosaic_0001>

<llo_original>
// kernel: tpu_custom_call.1
$region0: #{tpu_custom_call.1}
  #allocation0 [shape = 'u32[]', space=smem, size = 0x4, offset = 0x4, fixed_abs, tag = 'smem constant byte address 0x4 - core index']
  #allocation1 [shape = 'u32[72,128]{1,0:T(1,128)}', space=vmem, size = 0x9000, scoped, tag = 'internal scratch']
  #allocation2 [shape = 'f32[16,16]{1,0:T(8,128)}', space=vmem, size = 0x2000, scoped, tag = 'scratch operand']
  %s0 = inlined_call_operand.vmem [shape: s32[1,512], index: 0, kind: input, shape index: {}]
  %s1 = inlined_call_operand.vmem [shape: s32[1,512], index: 1, kind: input, shape index: {}]
  %s2 = inlined_call_operand.vmem [shape: f32[8,16], index: 2, kind: input, shape index: {}]
  %s3 = inlined_call_operand.vmem [shape: f32[16,16], index: 3, kind: input, shape index: {}]
  %s4 = inlined_call_operand.vmem [shape: f32[32,8], index: 4, kind: input, shape index: {}]
  %s5 = inlined_call_operand.vmem [shape: f32[32,32], index: 5, kind: input, shape index: {}]
  %s6 = inlined_call_operand.vmem [shape: f32[16,16], index: 6, kind: input, shape index: {}]
  %s7 = inlined_call_operand.vmem [shape: f32[16,1], index: 7, kind: input, shape index: {}]
  %s8 = inlined_call_operand.vmem [shape: f32[16,1], index: 8, kind: input, shape index: {}]
  %s9 = inlined_call_operand.vmem [shape: f32[16,1], index: 9, kind: input, shape index: {}]
  %s10 = inlined_call_operand.hbm [shape: f32[1,512], index: 10, kind: output, shape index: {}]
  %s11 = sld [smem:[#allocation0]]
  $region54: #{tpu_custom_call.1} parent=0
    _
  %s13 = ssub.s32 1, %s11
  %s14 = scalar_select 0, %s13, %s11
  $region1: #{tpu_custom_call.1} parent=0
    #allocation3 [shape = 'u8[2048]{0}', space=vmem, size = 0x800, scoped, tag = 'output window, operand 0, single buffered']
    #allocation4 [shape = 's32[1]{0}', space=sflag, size = 0x4, scoped, tag = 'scoped memory for tpu_custom_call.1']
    %15 = vsyncpa [#allocation4], 0
    // Predicated region
    $region2: #{tpu_custom_call.1} parent=1 // pred_check
      _
    $region3: #{tpu_custom_call.1} parent=1 // pred_check_branch
      %17 = sbr.rel (0) target = $region5
    $region4: #{tpu_custom_call.1} parent=1 // pred_region
      _
    $region5: #{tpu_custom_call.1} parent=1 // pred_fallthru
      _
    // Predicated region
    $region6: #{tpu_custom_call.1} parent=1 // pred_check
      _
    $region7: #{tpu_custom_call.1} parent=1 // pred_check_branch
      %19 = sbr.rel (0) target = $region9
    $region8: #{tpu_custom_call.1} parent=1 // pred_region
      _
    $region9: #{tpu_custom_call.1} parent=1 // pred_fallthru
      _
    // Predicated region
    $region10: #{tpu_custom_call.1} parent=1 // pred_check
      _
    $region11: #{tpu_custom_call.1} parent=1 // pred_check_branch
      %21 = sbr.rel (0) target = $region13
    $region12: #{tpu_custom_call.1} parent=1 // pred_region
      _
    $region13: #{tpu_custom_call.1} parent=1 // pred_fallthru
      _
    // Predicated region
    $region14: #{tpu_custom_call.1} parent=1 // pred_check
      _
    $region15: #{tpu_custom_call.1} parent=1 // pred_check_branch
      %23 = sbr.rel (0) target = $region17
    $region16: #{tpu_custom_call.1} parent=1 // pred_region
      _
    $region17: #{tpu_custom_call.1} parent=1 // pred_fallthru
      _
    // Predicated region
    $region18: #{tpu_custom_call.1} parent=1 // pred_check
      _
    $region19: #{tpu_custom_call.1} parent=1 // pred_check_branch
      %25 = sbr.rel (0) target = $region21
    $region20: #{tpu_custom_call.1} parent=1 // pred_region
      _
    $region21: #{tpu_custom_call.1} parent=1 // pred_fallthru
      _
    // Predicated region
    $region22: #{tpu_custom_call.1} parent=1 // pred_check
      _
    $region23: #{tpu_custom_call.1} parent=1 // pred_check_branch
      %27 = sbr.rel (0) target = $region25
    $region24: #{tpu_custom_call.1} parent=1 // pred_region
      _
    $region25: #{tpu_custom_call.1} parent=1 // pred_fallthru
      _
    // Predicated region
    $region26: #{tpu_custom_call.1} parent=1 // pred_check
      _
    $region27: #{tpu_custom_call.1} parent=1 // pred_check_branch
      %29 = sbr.rel (0) target = $region29
    $region28: #{tpu_custom_call.1} parent=1 // pred_region
      _
    $region29: #{tpu_custom_call.1} parent=1 // pred_fallthru
      _
    // Predicated region
    $region30: #{tpu_custom_call.1} parent=1 // pred_check
      _
    $region31: #{tpu_custom_call.1} parent=1 // pred_check_branch
      %31 = sbr.rel (0) target = $region33
    $region32: #{tpu_custom_call.1} parent=1 // pred_region
      _
    $region33: #{tpu_custom_call.1} parent=1 // pred_fallthru
      _
    // Predicated region
    $region34: #{tpu_custom_call.1} parent=1 // pred_check
      _
    $region35: #{tpu_custom_call.1} parent=1 // pred_check_branch
      %33 = sbr.rel (0) target = $region37
    $region36: #{tpu_custom_call.1} parent=1 // pred_region
      _
    $region37: #{tpu_custom_call.1} parent=1 // pred_fallthru
      _
    // Predicated region
    $region38: #{tpu_custom_call.1} parent=1 // pred_check
      _
    $region39: #{tpu_custom_call.1} parent=1 // pred_check_branch
      %35 = sbr.rel (0) target = $region41
    $region40: #{tpu_custom_call.1} parent=1 // pred_region
      _
    $region41: #{tpu_custom_call.1} parent=1 // pred_fallthru
      _
    %p36 = scmp.eq.s32.totalorder 0, 0
    // Predicated region
    $region42: #{tpu_custom_call.1} parent=1 // pred_check
      %p37 = pneg %p36
    $region43: #{tpu_custom_call.1} parent=1 // pred_check_branch
      %39 = sbr.rel (%p37) target = $region45
    $region44: #{tpu_custom_call.1} parent=1 // pred_region
      %v40 = vld [vmem:[%s4] sm:$0xff]
      %v41 = vld [vmem:[%s4 + $0x8] sm:$0xff]
      %v42 = vld [vmem:[%s4 + $0x10] sm:$0xff]
      %v43 = vld [vmem:[%s4 + $0x18] sm:$0xff]
      %v44 = vld [vmem:[%s2] sm:$0xff]
      %vm45 = vcmask 64512
      %v47 = vsel %vm45, %v40, 0
      %v50 = vsel %vm45, %v41, 0
      %v53 = vsel %vm45, %v42, 0
      %v56 = vsel %vm45, %v43, 0
      %58 = vmatpush.msra.mxu0 0.0
      %59 = vmatpush.msra.mxu0 0.0
      %60 = vmatpush.msra.mxu0 0.0
      %61 = vmatpush.msra.mxu0 0.0
      %62 = vmatpush.msra.mxu0 0.0
      %63 = vmatpush.msra.mxu0 0.0
      %64 = vmatpush.msra.mxu0 0.0
      %65 = vmatpush.msra.mxu0 0.0
      %66 = vmatpush.msra.mxu0 0.0
      %67 = vmatpush.msra.mxu0 0.0
      %68 = vmatpush.msra.mxu0 0.0
      %69 = vmatpush.msra.mxu0 0.0
      %70 = vmatpush.msra.mxu0 0.0
      %71 = vmatpush.msra.mxu0 0.0
      %72 = vmatpush.msra.mxu0 0.0
      %73 = vmatpush.msra.mxu0 %v44
      %74 = vmatmul.f32.gmra.mxu0 %v47
      %v75 = vpop.f32.mrf.mxu0
      %v76 = vadd.f32 0.0, %v75
      %77 = vmatmul.f32.gmra.mxu0 %v50
      %v78 = vpop.f32.mrf.mxu0
      %v79 = vadd.f32 0.0, %v78
      %80 = vmatmul.f32.gmra.mxu0 %v53
      %v81 = vpop.f32.mrf.mxu0
      %v82 = vadd.f32 0.0, %v81
      %83 = vmatmul.f32.gmra.mxu0 %v56
      %v84 = vpop.f32.mrf.mxu0
      %v85 = vadd.f32 0.0, %v84
      %86 = vdwg.mxu0
      %v87 = vld [vmem:[%s3] sm:$0xff]
      %v88 = vld [vmem:[%s3 + $0x8] sm:$0xff]
      %vm89 = vcmask 130048
      %v91 = vsel %vm89, %v76, 0
      %v94 = vsel %vm89, %v79, 0
      %v97 = vsel %vm89, %v82, 0
      %v100 = vsel %vm89, %v85, 0
      %102 = vmatpush.msra.mxu0 0.0
      %103 = vmatpush.msra.mxu0 0.0
      %104 = vmatpush.msra.mxu0 0.0
      %105 = vmatpush.msra.mxu0 0.0
      %106 = vmatpush.msra.mxu0 0.0
      %107 = vmatpush.msra.mxu0 0.0
      %108 = vmatpush.msra.mxu0 0.0
      %109 = vmatpush.msra.mxu0 0.0
      %110 = vmatpush.msra.mxu0 0.0
      %111 = vmatpush.msra.mxu0 0.0
      %112 = vmatpush.msra.mxu0 0.0
      %113 = vmatpush.msra.mxu0 0.0
      %114 = vmatpush.msra.mxu0 0.0
      %115 = vmatpush.msra.mxu0 0.0
      %116 = vmatpush.msra.mxu0 %v88
      %117 = vmatpush.msra.mxu0 %v87
      %118 = vmatmul.f32.gmra.mxu0 %v91
      %v119 = vpop.f32.mrf.mxu0
      %v120 = vadd.f32 0.0, %v119
      %121 = vmatmul.f32.gmra.mxu0 %v94
      %v122 = vpop.f32.mrf.mxu0
      %v123 = vadd.f32 0.0, %v122
      %124 = vmatmul.f32.gmra.mxu0 %v97
      %v125 = vpop.f32.mrf.mxu0
      %v126 = vadd.f32 0.0, %v125
      %127 = vmatmul.f32.gmra.mxu0 %v100
      %v128 = vpop.f32.mrf.mxu0
      %v129 = vadd.f32 0.0, %v128
      %130 = vdwg.mxu0
      %v131 = vmax.f32 %v120, 0.0
      %v132 = vmax.f32 %v123, 0.0
      %v133 = vmax.f32 %v126, 0.0
      %v134 = vmax.f32 %v129, 0.0
      %v135 = vld [vmem:[%s5] sm:$0xff]
      %v136 = vld [vmem:[%s5 + $0x8] sm:$0xff]
      %v137 = vld [vmem:[%s5 + $0x10] sm:$0xff]
      %v138 = vld [vmem:[%s5 + $0x18] sm:$0xff]
      %vm139 = vcmask 261120
      %v141 = vsel %vm139, %v135, 0
      %v144 = vsel %vm139, %v136, 0
      %v147 = vsel %vm139, %v137, 0
      %v150 = vsel %vm139, %v138, 0
      %152 = vmatpush.msra.mxu0 0.0
      %153 = vmatpush.msra.mxu0 0.0
      %154 = vmatpush.msra.mxu0 0.0
      %155 = vmatpush.msra.mxu0 0.0
      %156 = vmatpush.msra.mxu0 0.0
      %157 = vmatpush.msra.mxu0 0.0
      %158 = vmatpush.msra.mxu0 0.0
      %159 = vmatpush.msra.mxu0 0.0
      %160 = vmatpush.msra.mxu0 0.0
      %161 = vmatpush.msra.mxu0 0.0
      %162 = vmatpush.msra.mxu0 0.0
      %163 = vmatpush.msra.mxu0 0.0
      %164 = vmatpush.msra.mxu0 %v134
      %165 = vmatpush.msra.mxu0 %v133
      %166 = vmatpush.msra.mxu0 %v132
      %167 = vmatpush.msra.mxu0 %v131
      %168 = vmatmul.f32.gmra.mxu0 %v141
      %v169 = vpop.f32.mrf.mxu0
      %v170 = vadd.f32 0.0, %v169
      %171 = vmatmul.f32.gmra.mxu0 %v144
      %v172 = vpop.f32.mrf.mxu0
      %v173 = vadd.f32 0.0, %v172
      %174 = vmatmul.f32.gmra.mxu0 %v147
      %v175 = vpop.f32.mrf.mxu0
      %v176 = vadd.f32 0.0, %v175
      %177 = vmatmul.f32.gmra.mxu0 %v150
      %v178 = vpop.f32.mrf.mxu0
      %v179 = vadd.f32 0.0, %v178
      %180 = vdwg.mxu0
      %v182 = vsel %vm89, %v170, 0
      %v185 = vsel %vm89, %v173, 0
      %v188 = vsel %vm89, %v176, 0
      %v191 = vsel %vm89, %v179, 0
      %193 = vmatpush.msra.mxu0 0.0
      %194 = vmatpush.msra.mxu0 0.0
      %195 = vmatpush.msra.mxu0 0.0
      %196 = vmatpush.msra.mxu0 0.0
      %197 = vmatpush.msra.mxu0 0.0
      %198 = vmatpush.msra.mxu0 0.0
      %199 = vmatpush.msra.mxu0 0.0
      %200 = vmatpush.msra.mxu0 0.0
      %201 = vmatpush.msra.mxu0 0.0
      %202 = vmatpush.msra.mxu0 0.0
      %203 = vmatpush.msra.mxu0 0.0
      %204 = vmatpush.msra.mxu0 0.0
      %205 = vmatpush.msra.mxu0 0.0
      %206 = vmatpush.msra.mxu0 0.0
      %207 = vmatpush.msra.mxu0 %v88
      %208 = vmatpush.msra.mxu0 %v87
      %209 = vmatmul.f32.gmra.mxu0 %v182
      %v210 = vpop.f32.mrf.mxu0
      %v211 = vadd.f32 0.0, %v210
      %212 = vmatmul.f32.gmra.mxu0 %v185
      %v213 = vpop.f32.mrf.mxu0
      %v214 = vadd.f32 0.0, %v213
      %215 = vmatmul.f32.gmra.mxu0 %v188
      %v216 = vpop.f32.mrf.mxu0
      %v217 = vadd.f32 0.0, %v216
      %218 = vmatmul.f32.gmra.mxu0 %v191
      %v219 = vpop.f32.mrf.mxu0
      %v220 = vadd.f32 0.0, %v219
      %221 = vdwg.mxu0
      %v222 = vld [vmem:[%s6] sm:$0xff]
      %v223 = vld [vmem:[%s6 + $0x8] sm:$0xff]
      %v224 = vmul.f32 %v217, 1.442695
      %v225 = vpow.pop %v224
      %v226 = vmul.f32 %v220, 1.442695
      %v227 = vpow.pop %v226
      %v228 = vmul.f32 %v222, %v225
      %v229 = vmul.f32 %v223, %v227
      %v230 = vadd.f32 %v228, %v211
      %v231 = vadd.f32 %v229, %v214
      %232 = vst.msk [vmem:[#allocation2] sm:$0xff] %vm89, %v230
      %233 = vst.msk [vmem:[#allocation2 + $0x8] sm:$0xff] %vm89, %v231
    $region45: #{tpu_custom_call.1} parent=1 // pred_fallthru
      _
    %v234 = vlaneseq
    %v235 = vshrl.u32 %v234, 7
    %v236 = vadd.s32 %v235, 8
    %v237 = vld [vmem:[%s0] sm:$0xf]
    %v238 = vperm.slane %v237, 0
    %v239 = vperm.slane %v237, 1
    %v240 = vperm.slane %v237, 2
    %v241 = vperm.slane %v237, 3
    %vm242 = vcmp.eq.s32.totalorder %v235, %v238
    %vm243 = vcmp.eq.s32.totalorder %v235, %v239
    %vm244 = vcmp.eq.s32.totalorder %v235, %v240
    %vm245 = vcmp.eq.s32.totalorder %v235, %v241
    %vm246 = vcmp.eq.s32.totalorder %v236, %v238
    %vm247 = vcmp.eq.s32.totalorder %v236, %v239
    %vm248 = vcmp.eq.s32.totalorder %v236, %v240
    %vm249 = vcmp.eq.s32.totalorder %v236, %v241
    %v250 = vsel %vm242, 1, 0
    %v251 = vsel %vm243, 1, 0
    %v252 = vsel %vm244, 1, 0
    %v253 = vsel %vm245, 1, 0
    %v254 = vsel %vm246, 1, 0
    %v255 = vsel %vm247, 1, 0
    %v256 = vsel %vm248, 1, 0
    %v257 = vsel %vm249, 1, 0
    %v258 = vcvt.s32.f32 %v250
    %v259 = vcvt.s32.f32 %v251
    %v260 = vcvt.s32.f32 %v252
    %v261 = vcvt.s32.f32 %v253
    %v262 = vcvt.s32.f32 %v254
    %v263 = vcvt.s32.f32 %v255
    %v264 = vcvt.s32.f32 %v256
    %v265 = vcvt.s32.f32 %v257
    %v266 = vld [vmem:[%s1] sm:$0xf]
    %v267 = vperm.slane %v266, 0
    %v268 = vperm.slane %v266, 1
    %v269 = vperm.slane %v266, 2
    %v270 = vperm.slane %v266, 3
    %vm271 = vcmp.eq.s32.totalorder %v235, %v267
    %vm272 = vcmp.eq.s32.totalorder %v235, %v268
    %vm273 = vcmp.eq.s32.totalorder %v235, %v269
    %vm274 = vcmp.eq.s32.totalorder %v235, %v270
    %vm275 = vcmp.eq.s32.totalorder %v236, %v267
    %vm276 = vcmp.eq.s32.totalorder %v236, %v268
    %vm277 = vcmp.eq.s32.totalorder %v236, %v269
    %vm278 = vcmp.eq.s32.totalorder %v236, %v270
    %v279 = vsel %vm271, 1, 0
    %v280 = vsel %vm272, 1, 0
    %v281 = vsel %vm273, 1, 0
    %v282 = vsel %vm274, 1, 0
    %v283 = vsel %vm275, 1, 0
    %v284 = vsel %vm276, 1, 0
    %v285 = vsel %vm277, 1, 0
    %v286 = vsel %vm278, 1, 0
    %v287 = vcvt.s32.f32 %v279
    %v288 = vcvt.s32.f32 %v280
    %v289 = vcvt.s32.f32 %v281
    %v290 = vcvt.s32.f32 %v282
    %v291 = vcvt.s32.f32 %v283
    %v292 = vcvt.s32.f32 %v284
    %v293 = vcvt.s32.f32 %v285
    %v294 = vcvt.s32.f32 %v286
    %v295 = vld [vmem:[#allocation2] sm:$0xff]
    %v296 = vld [vmem:[#allocation2 + $0x8] sm:$0xff]
    %vm297 = vcmask 130048
    %v299 = vsel %vm297, %v295, 0
    %v302 = vsel %vm297, %v296, 0
    %304 = vmatpush.msra.mxu0 0.0
    %305 = vmatpush.msra.mxu0 0.0
    %306 = vmatpush.msra.mxu0 0.0
    %307 = vmatpush.msra.mxu0 0.0
    %308 = vmatpush.msra.mxu0 0.0
    %309 = vmatpush.msra.mxu0 0.0
    %310 = vmatpush.msra.mxu0 0.0
    %311 = vmatpush.msra.mxu0 0.0
    %312 = vmatpush.msra.mxu0 0.0
    %313 = vmatpush.msra.mxu0 0.0
    %314 = vmatpush.msra.mxu0 0.0
    %315 = vmatpush.msra.mxu0 0.0
    %316 = vmatpush.msra.mxu0 0.0
    %317 = vmatpush.msra.mxu0 0.0
    %318 = vmatpush.msra.mxu0 %v262
    %319 = vmatpush.msra.mxu0 %v258
    %320 = vmatmul.f32.gmra.mxu0 %v299
    %v321 = vpop.f32.mrf.mxu0
    %v322 = vadd.f32 0.0, %v321
    %323 = vmatmul.f32.gmra.mxu0 %v302
    %v324 = vpop.f32.mrf.mxu0
    %v325 = vadd.f32 0.0, %v324
    %326 = vdwg.mxu0
    %327 = vmatpush.msra.mxu0 0.0
    %328 = vmatpush.msra.mxu0 0.0
    %329 = vmatpush.msra.mxu0 0.0
    %330 = vmatpush.msra.mxu0 0.0
    %331 = vmatpush.msra.mxu0 0.0
    %332 = vmatpush.msra.mxu0 0.0
    %333 = vmatpush.msra.mxu0 0.0
    %334 = vmatpush.msra.mxu0 0.0
    %335 = vmatpush.msra.mxu0 0.0
    %336 = vmatpush.msra.mxu0 0.0
    %337 = vmatpush.msra.mxu0 0.0
    %338 = vmatpush.msra.mxu0 0.0
    %339 = vmatpush.msra.mxu0 0.0
    %340 = vmatpush.msra.mxu0 0.0
    %341 = vmatpush.msra.mxu0 %v263
    %342 = vmatpush.msra.mxu0 %v259
    %343 = vmatmul.f32.gmra.mxu0 %v299
    %v344 = vpop.f32.mrf.mxu0
    %v345 = vadd.f32 0.0, %v344
    %346 = vmatmul.f32.gmra.mxu0 %v302
    %v347 = vpop.f32.mrf.mxu0
    %v348 = vadd.f32 0.0, %v347
    %349 = vdwg.mxu0
    %350 = vmatpush.msra.mxu0 0.0
    %351 = vmatpush.msra.mxu0 0.0
    %352 = vmatpush.msra.mxu0 0.0
    %353 = vmatpush.msra.mxu0 0.0
    %354 = vmatpush.msra.mxu0 0.0
    %355 = vmatpush.msra.mxu0 0.0
    %356 = vmatpush.msra.mxu0 0.0
    %357 = vmatpush.msra.mxu0 0.0
    %358 = vmatpush.msra.mxu0 0.0
    %359 = vmatpush.msra.mxu0 0.0
    %360 = vmatpush.msra.mxu0 0.0
    %361 = vmatpush.msra.mxu0 0.0
    %362 = vmatpush.msra.mxu0 0.0
    %363 = vmatpush.msra.mxu0 0.0
    %364 = vmatpush.msra.mxu0 %v264
    %365 = vmatpush.msra.mxu0 %v260
    %366 = vmatmul.f32.gmra.mxu0 %v299
    %v367 = vpop.f32.mrf.mxu0
    %v368 = vadd.f32 0.0, %v367
    %369 = vmatmul.f32.gmra.mxu0 %v302
    %v370 = vpop.f32.mrf.mxu0
    %v371 = vadd.f32 0.0, %v370
    %372 = vdwg.mxu0
    %373 = vmatpush.msra.mxu0 0.0
    %374 = vmatpush.msra.mxu0 0.0
    %375 = vmatpush.msra.mxu0 0.0
    %376 = vmatpush.msra.mxu0 0.0
    %377 = vmatpush.msra.mxu0 0.0
    %378 = vmatpush.msra.mxu0 0.0
    %379 = vmatpush.msra.mxu0 0.0
    %380 = vmatpush.msra.mxu0 0.0
    %381 = vmatpush.msra.mxu0 0.0
    %382 = vmatpush.msra.mxu0 0.0
    %383 = vmatpush.msra.mxu0 0.0
    %384 = vmatpush.msra.mxu0 0.0
    %385 = vmatpush.msra.mxu0 0.0
    %386 = vmatpush.msra.mxu0 0.0
    %387 = vmatpush.msra.mxu0 %v265
    %388 = vmatpush.msra.mxu0 %v261
    %389 = vmatmul.f32.gmra.mxu0 %v299
    %v390 = vpop.f32.mrf.mxu0
    %v391 = vadd.f32 0.0, %v390
    %392 = vmatmul.f32.gmra.mxu0 %v302
    %v393 = vpop.f32.mrf.mxu0
    %v394 = vadd.f32 0.0, %v393
    %395 = vdwg.mxu0
    %396 = vmatpush.msra.mxu0 0.0
    %397 = vmatpush.msra.mxu0 0.0
    %398 = vmatpush.msra.mxu0 0.0
    %399 = vmatpush.msra.mxu0 0.0
    %400 = vmatpush.msra.mxu0 0.0
    %401 = vmatpush.msra.mxu0 0.0
    %402 = vmatpush.msra.mxu0 0.0
    %403 = vmatpush.msra.mxu0 0.0
    %404 = vmatpush.msra.mxu0 0.0
    %405 = vmatpush.msra.mxu0 0.0
    %406 = vmatpush.msra.mxu0 0.0
    %407 = vmatpush.msra.mxu0 0.0
    %408 = vmatpush.msra.mxu0 0.0
    %409 = vmatpush.msra.mxu0 0.0
    %410 = vmatpush.msra.mxu0 %v291
    %411 = vmatpush.msra.mxu0 %v287
    %412 = vmatmul.f32.gmra.mxu0 %v299
    %v413 = vpop.f32.mrf.mxu0
    %v414 = vadd.f32 0.0, %v413
    %415 = vmatmul.f32.gmra.mxu0 %v302
    %v416 = vpop.f32.mrf.mxu0
    %v417 = vadd.f32 0.0, %v416
    %418 = vdwg.mxu0
    %419 = vmatpush.msra.mxu0 0.0
    %420 = vmatpush.msra.mxu0 0.0
    %421 = vmatpush.msra.mxu0 0.0
    %422 = vmatpush.msra.mxu0 0.0
    %423 = vmatpush.msra.mxu0 0.0
    %424 = vmatpush.msra.mxu0 0.0
    %425 = vmatpush.msra.mxu0 0.0
    %426 = vmatpush.msra.mxu0 0.0
    %427 = vmatpush.msra.mxu0 0.0
    %428 = vmatpush.msra.mxu0 0.0
    %429 = vmatpush.msra.mxu0 0.0
    %430 = vmatpush.msra.mxu0 0.0
    %431 = vmatpush.msra.mxu0 0.0
    %432 = vmatpush.msra.mxu0 0.0
    %433 = vmatpush.msra.mxu0 %v292
    %434 = vmatpush.msra.mxu0 %v288
    %435 = vmatmul.f32.gmra.mxu0 %v299
    %v436 = vpop.f32.mrf.mxu0
    %v437 = vadd.f32 0.0, %v436
    %438 = vmatmul.f32.gmra.mxu0 %v302
    %v439 = vpop.f32.mrf.mxu0
    %v440 = vadd.f32 0.0, %v439
    %441 = vdwg.mxu0
    %442 = vmatpush.msra.mxu0 0.0
    %443 = vmatpush.msra.mxu0 0.0
    %444 = vmatpush.msra.mxu0 0.0
    %445 = vmatpush.msra.mxu0 0.0
    %446 = vmatpush.msra.mxu0 0.0
    %447 = vmatpush.msra.mxu0 0.0
    %448 = vmatpush.msra.mxu0 0.0
    %449 = vmatpush.msra.mxu0 0.0
    %450 = vmatpush.msra.mxu0 0.0
    %451 = vmatpush.msra.mxu0 0.0
    %452 = vmatpush.msra.mxu0 0.0
    %453 = vmatpush.msra.mxu0 0.0
    %454 = vmatpush.msra.mxu0 0.0
    %455 = vmatpush.msra.mxu0 0.0
    %456 = vmatpush.msra.mxu0 %v293
    %457 = vmatpush.msra.mxu0 %v289
    %458 = vmatmul.f32.gmra.mxu0 %v299
    %v459 = vpop.f32.mrf.mxu0
    %v460 = vadd.f32 0.0, %v459
    %461 = vmatmul.f32.gmra.mxu0 %v302
    %v462 = vpop.f32.mrf.mxu0
    %v463 = vadd.f32 0.0, %v462
    %464 = vdwg.mxu0
    %465 = vmatpush.msra.mxu0 0.0
    %466 = vmatpush.msra.mxu0 0.0
    %467 = vmatpush.msra.mxu0 0.0
    %468 = vmatpush.msra.mxu0 0.0
    %469 = vmatpush.msra.mxu0 0.0
    %470 = vmatpush.msra.mxu0 0.0
    %471 = vmatpush.msra.mxu0 0.0
    %472 = vmatpush.msra.mxu0 0.0
    %473 = vmatpush.msra.mxu0 0.0
    %474 = vmatpush.msra.mxu0 0.0
    %475 = vmatpush.msra.mxu0 0.0
    %476 = vmatpush.msra.mxu0 0.0
    %477 = vmatpush.msra.mxu0 0.0
    %478 = vmatpush.msra.mxu0 0.0
    %479 = vmatpush.msra.mxu0 %v294
    %480 = vmatpush.msra.mxu0 %v290
    %481 = vmatmul.f32.gmra.mxu0 %v299
    %v482 = vpop.f32.mrf.mxu0
    %v483 = vadd.f32 0.0, %v482
    %484 = vmatmul.f32.gmra.mxu0 %v302
    %v485 = vpop.f32.mrf.mxu0
    %v486 = vadd.f32 0.0, %v485
    %487 = vdwg.mxu0
    %v488 = vld [vmem:[%s7] sm:$0xff]
    %v489 = vld [vmem:[%s7 + $0x8] sm:$0xff]
    %v490 = vmax.f32 %v322, 0.0
    %v491 = vmax.f32 %v345, 0.0
    %v492 = vmax.f32 %v368, 0.0
    %v493 = vmax.f32 %v391, 0.0
    %v494 = vmax.f32 %v325, 0.0
    %v495 = vmax.f32 %v348, 0.0
    %v496 = vmax.f32 %v371, 0.0
    %v497 = vmax.f32 %v394, 0.0
    %499 = vset.pattern.permute.xlu0 0
    %500 = vperm.xlu0 %499, %v488
    %v501 = vpop.permute.xlu0 %500
    %504 = vset.pattern.permute.xlu0 0
    %505 = vperm.xlu0 %504, %v489
    %v506 = vpop.permute.xlu0 %505
    %v508 = vmul.f32 %v501, %v490
    %v509 = vmul.f32 %v501, %v491
    %v510 = vmul.f32 %v501, %v492
    %v511 = vmul.f32 %v501, %v493
    %v512 = vmul.f32 %v506, %v494
    %v513 = vmul.f32 %v506, %v495
    %v514 = vmul.f32 %v506, %v496
    %v515 = vmul.f32 %v506, %v497
    %v516 = vld [vmem:[%s8] sm:$0xff]
    %v517 = vld [vmem:[%s8 + $0x8] sm:$0xff]
    %v518 = vmax.f32 %v414, 0.0
    %v519 = vmax.f32 %v437, 0.0
    %v520 = vmax.f32 %v460, 0.0
    %v521 = vmax.f32 %v483, 0.0
    %v522 = vmax.f32 %v417, 0.0
    %v523 = vmax.f32 %v440, 0.0
    %v524 = vmax.f32 %v463, 0.0
    %v525 = vmax.f32 %v486, 0.0
    %527 = vset.pattern.permute.xlu0 0
    %528 = vperm.xlu0 %527, %v516
    %v529 = vpop.permute.xlu0 %528
    %532 = vset.pattern.permute.xlu0 0
    %533 = vperm.xlu0 %532, %v517
    %v534 = vpop.permute.xlu0 %533
    %v536 = vmul.f32 %v529, %v518
    %v537 = vmul.f32 %v529, %v519
    %v538 = vmul.f32 %v529, %v520
    %v539 = vmul.f32 %v529, %v521
    %v540 = vmul.f32 %v534, %v522
    %v541 = vmul.f32 %v534, %v523
    %v542 = vmul.f32 %v534, %v524
    %v543 = vmul.f32 %v534, %v525
    %v544 = vadd.f32 %v508, %v536
    %v545 = vadd.f32 %v509, %v537
    %v546 = vadd.f32 %v510, %v538
    %v547 = vadd.f32 %v511, %v539
    %v548 = vadd.f32 %v512, %v540
    %v549 = vadd.f32 %v513, %v541
    %v550 = vadd.f32 %v514, %v542
    %v551 = vadd.f32 %v515, %v543
    %v552 = vld [vmem:[%s9] sm:$0xff]
    %v553 = vld [vmem:[%s9 + $0x8] sm:$0xff]
    %v554 = vmul.f32 %v322, %v414
    %v555 = vmul.f32 %v345, %v437
    %v556 = vmul.f32 %v368, %v460
    %v557 = vmul.f32 %v391, %v483
    %v558 = vmul.f32 %v325, %v417
    %v559 = vmul.f32 %v348, %v440
    %v560 = vmul.f32 %v371, %v463
    %v561 = vmul.f32 %v394, %v486
    %563 = vset.pattern.permute.xlu0 0
    %564 = vperm.xlu0 %563, %v552
    %v565 = vpop.permute.xlu0 %564
    %568 = vset.pattern.permute.xlu0 0
    %569 = vperm.xlu0 %568, %v553
    %v570 = vpop.permute.xlu0 %569
    %v572 = vmul.f32 %v565, %v554
    %v573 = vmul.f32 %v565, %v555
    %v574 = vmul.f32 %v565, %v556
    %v575 = vmul.f32 %v565, %v557
    %v576 = vmul.f32 %v570, %v558
    %v577 = vmul.f32 %v570, %v559
    %v578 = vmul.f32 %v570, %v560
    %v579 = vmul.f32 %v570, %v561
    %v580 = vadd.f32 %v544, %v572
    %v581 = vadd.f32 %v545, %v573
    %v582 = vadd.f32 %v546, %v574
    %v583 = vadd.f32 %v547, %v575
    %v584 = vadd.f32 %v548, %v576
    %v585 = vadd.f32 %v549, %v577
    %v586 = vadd.f32 %v550, %v578
    %v587 = vadd.f32 %v551, %v579
    %v588 = vadd.f32 %v580, %v584
    %v589 = vrot.slane %v588, 4
    %v590 = vadd.f32 %v588, %v589
    %v591 = vrot.slane %v590, 2
    %v592 = vadd.f32 %v590, %v591
    %v593 = vrot.slane %v592, 1
    %v594 = vadd.f32 %v592, %v593
    %v595 = vadd.f32 %v581, %v585
    %v596 = vrot.slane %v595, 4
    %v597 = vadd.f32 %v595, %v596
    %v598 = vrot.slane %v597, 2
    %v599 = vadd.f32 %v597, %v598
    %v600 = vrot.slane %v599, 1
    %v601 = vadd.f32 %v599, %v600
    %v602 = vadd.f32 %v582, %v586
    %v603 = vrot.slane %v602, 4
    %v604 = vadd.f32 %v602, %v603
    %v605 = vrot.slane %v604, 2
    %v606 = vadd.f32 %v604, %v605
    %v607 = vrot.slane %v606, 1
    %v608 = vadd.f32 %v606, %v607
    %v609 = vadd.f32 %v583, %v587
    %v610 = vrot.slane %v609, 4
    %v611 = vadd.f32 %v609, %v610
    %v612 = vrot.slane %v611, 2
    %v613 = vadd.f32 %v611, %v612
    %v614 = vrot.slane %v613, 1
    %v615 = vadd.f32 %v613, %v614
    %v616 = vxor.u32 %v594, 2147483648
    %v617 = vxor.u32 %v601, 2147483648
    %v618 = vxor.u32 %v608, 2147483648
    %v619 = vxor.u32 %v615, 2147483648
    %v620 = vmul.f32 %v616, 1.442695
    %v621 = vpow.pop %v620
    %v622 = vmul.f32 %v617, 1.442695
    %v623 = vpow.pop %v622
    %v624 = vmul.f32 %v618, 1.442695
    %v625 = vpow.pop %v624
    %v626 = vmul.f32 %v619, 1.442695
    %v627 = vpow.pop %v626
    %v628 = vadd.f32 %v621, 1.0
    %v629 = vadd.f32 %v623, 1.0
    %v630 = vadd.f32 %v625, 1.0
    %v631 = vadd.f32 %v627, 1.0
    %v632 = vrcp.pop %v628
    %v633 = vmul.f32 %v628, %v632
    %v634 = vsub.f32 1.0, %v633
    %v635 = vmul.f32 %v632, %v634
    %v636 = vadd.f32 %v632, %v635
    %vm637 = vweird.f32 %v628
    %vm638 = vweird.f32 %v632
    %vm639 = vmor %vm637, %vm638
    %v640 = vsel %vm639, %v632, %v636
    %v641 = vand.u32 2147483647, %v628
    %vm642 = vcmp.eq.f32.partialorder %v641, 8.507059e+37
    %v643 = vand.u32 %v628, 2147483648
    %v644 = vor.u32 1.1754944e-38, %v643
    %v645 = vsel %vm642, %v644, %v640
    %v646 = vmul.f32 1.0, %v645
    %v647 = vrcp.pop %v629
    %v648 = vmul.f32 %v629, %v647
    %v649 = vsub.f32 1.0, %v648
    %v650 = vmul.f32 %v647, %v649
    %v651 = vadd.f32 %v647, %v650
    %vm652 = vweird.f32 %v629
    %vm653 = vweird.f32 %v647
    %vm654 = vmor %vm652, %vm653
    %v655 = vsel %vm654, %v647, %v651
    %v656 = vand.u32 2147483647, %v629
    %vm657 = vcmp.eq.f32.partialorder %v656, 8.507059e+37
    %v658 = vand.u32 %v629, 2147483648
    %v659 = vor.u32 1.1754944e-38, %v658
    %v660 = vsel %vm657, %v659, %v655
    %v661 = vmul.f32 1.0, %v660
    %v662 = vrcp.pop %v630
    %v663 = vmul.f32 %v630, %v662
    %v664 = vsub.f32 1.0, %v663
    %v665 = vmul.f32 %v662, %v664
    %v666 = vadd.f32 %v662, %v665
    %vm667 = vweird.f32 %v630
    %vm668 = vweird.f32 %v662
    %vm669 = vmor %vm667, %vm668
    %v670 = vsel %vm669, %v662, %v666
    %v671 = vand.u32 2147483647, %v630
    %vm672 = vcmp.eq.f32.partialorder %v671, 8.507059e+37
    %v673 = vand.u32 %v630, 2147483648
    %v674 = vor.u32 1.1754944e-38, %v673
    %v675 = vsel %vm672, %v674, %v670
    %v676 = vmul.f32 1.0, %v675
    %v677 = vrcp.pop %v631
    %v678 = vmul.f32 %v631, %v677
    %v679 = vsub.f32 1.0, %v678
    %v680 = vmul.f32 %v677, %v679
    %v681 = vadd.f32 %v677, %v680
    %vm682 = vweird.f32 %v631
    %vm683 = vweird.f32 %v677
    %vm684 = vmor %vm682, %vm683
    %v685 = vsel %vm684, %v677, %v681
    %v686 = vand.u32 2147483647, %v631
    %vm687 = vcmp.eq.f32.partialorder %v686, 8.507059e+37
    %v688 = vand.u32 %v631, 2147483648
    %v689 = vor.u32 1.1754944e-38, %v688
    %v690 = vsel %vm687, %v689, %v685
    %v691 = vmul.f32 1.0, %v690
    %v696 = vrot.slane %v661, 7
    %v697 = vrot.slane %v676, 6
    %v698 = vrot.slane %v691, 5
    %vm699 = vcmask 1040384
    %v700 = vsel %vm699, %v646, %v696
    %vm701 = vcmask 1042434
    %v702 = vsel %vm701, %v697, %v698
    %vm703 = vcmask 1041408
    %v704 = vsel %vm703, %v700, %v702
    %v706 = vlaneseq
    %vm707 = vcmp.ge.s32.totalorder %v706, 0
    %vm708 = vcmp.lt.s32.totalorder %v706, 512
    %vm709 = vmand %vm707, %vm708
    %710 = vst.msk [vmem:[#allocation3] sm:$0xf] %vm709, %v704
    // Predicated region
    $region46: #{tpu_custom_call.1} parent=1 // pred_check
      _
    $region47: #{tpu_custom_call.1} parent=1 // pred_check_branch
      %712 = sbr.rel (0) target = $region49
    $region48: #{tpu_custom_call.1} parent=1 // pred_region
      %714 = vsyncadd [#allocation4], 0
      %s716 = sshll.u32 [#allocation3], 4
      %s717 = int_to_ptr.vmem [resolvable:$true] %s716
      %s718 = sshll.u32 %s10, 4
      %s719 = int_to_ptr.hbm [resolvable:$true] %s718
      %721 = dma.vmem_to_hbm [thread:$0]  %s717, 64, %s719, [#allocation4]
    $region49: #{tpu_custom_call.1} parent=1 // pred_fallthru
      _
    // Predicated region
    $region50: #{tpu_custom_call.1} parent=1 // pred_check
      _
    $region51: #{tpu_custom_call.1} parent=1 // pred_check_branch
      %723 = sbr.rel (0) target = $region53
    $region52: #{tpu_custom_call.1} parent=1 // pred_region
      %725 = dma.done [#allocation4], 64
    $region53: #{tpu_custom_call.1} parent=1 // pred_fallthru
      _
    %726 = vsyncpa [#allocation4], 1

</llo_original>
